<compile_context>
chip_gen: v6e
topology: v6e:2x2x1
jax: 0.10.0
libtpu: 0.0.40
codegen_flags: <defaults>
</compile_context>

<pallas_src>
import functools

import jax
import jax.numpy as jnp
from jax.experimental import pallas as pl
from jax.experimental.pallas import tpu as pltpu

LANES = 128
SUBLANES = 8


def _round_up(n, m):
    return ((n + m - 1) // m) * m


def _row_alignment(*dtypes):
    """Sublane multiple so DMA tiles stay packed for sub-32-bit dtypes."""
    itemsize = min(jnp.dtype(d).itemsize for d in dtypes)
    return SUBLANES * max(1, 4 // max(1, itemsize))  # f32->8, bf16->16, int8->32


def _device_config():
    """Generation-dependent block size / VMEM budget / TensorCore split."""
    try:
        kind = jax.devices()[0].device_kind.lower()
    except Exception:
        kind = ""
    if "v7" in kind:
        # 64 MiB physical VMEM (keep buffers well under 32 MiB), ~3.2 TB/s, 2 TCs.
        return dict(block_rows=8192, vmem_limit=40 << 20, ncores=2)
    if "v6" in kind:
        # 128 MiB VMEM, ~1.4 TB/s HBM, 1 TC: 8 MiB/input/buffer, 32 MiB buffered.
        return dict(block_rows=16384, vmem_limit=64 << 20, ncores=1)
    if "v5 lite" in kind or "v5e" in kind or "v5lite" in kind:
        # 128 MiB VMEM, ~0.8 TB/s HBM, 1 TC.
        return dict(block_rows=8192, vmem_limit=48 << 20, ncores=1)
    # Unknown / other generations (v4, v5p, ...): conservative defaults.
    return dict(block_rows=8192, vmem_limit=48 << 20, ncores=1)


def _mse_partial_kernel(x_ref, t_ref, out_ref, *, rows, blk, blocks_per_core,
                        n_full_blocks, has_tail, guard_blocks):
    """Accumulate sum((x - t)^2) for this core's row-blocks into an (8,128) slab."""
    c = pl.program_id(0)   # core axis
    i = pl.program_id(1)   # row-block within this core (reduction axis)
    b = c * blocks_per_core + i   # logical (unclamped) block id

    @pl.when(i == 0)
    def _():
        # Unconditional per-core init (also covers cores that only see phantoms).
        out_ref[...] = jnp.zeros_like(out_ref)

    def accumulate(masked):
        d = x_ref[...].astype(jnp.float32) - t_ref[...].astype(jnp.float32)
        sq = d * d
        if masked:
            # (blk,1) iota broadcast over lanes; only runs on the single partial
            # tail block (gated by pl.when below), so it is off the hot path.
            row_ids = b * blk + jax.lax.broadcasted_iota(jnp.int32, (blk, 1), 0)
            sq = jnp.where(row_ids < rows, sq, 0.0)
        # (blk,128) -> (blk//8, 8, 128) is tile-aligned; leading-axis sum is pure
        # VPU adds into the resident (8,128) accumulator.
        out_ref[...] += jnp.sum(sq.reshape(blk // SUBLANES, SUBLANES, LANES), axis=0)

    if not guard_blocks:
        # Fully aligned case: every block is full and real; no masks, no branches.
        accumulate(masked=False)
    else:
        @pl.when(b < n_full_blocks)
        def _():
            accumulate(masked=False)

        if has_tail:
            @pl.when(b == n_full_blocks)
            def _():
                accumulate(masked=True)
        # Phantom blocks (b >= n_blocks, clamped in the index_map) fall through
        # both guards and contribute nothing.


def content_loss_forward(x, target, *, block_rows=None):
    """ContentLoss.forward: returns (input, loss) with loss = mean((x - target)^2)."""
    assert x.shape == target.shape, "input / target shape mismatch"
    total_n = x.size

    cfg = _device_config()
    if block_rows is None:
        block_rows = cfg["block_rows"]
    ncores = cfg["ncores"]

    xf = x.reshape(-1)
    tf = target.reshape(-1)

    # Rare fallbacks for lane-misaligned / tiny tensors: one extra HBM pass, but
    # zero padding contributes 0 to the sum and the mean divides by the true N.
    rem = total_n % LANES
    if rem:
        xf = jnp.pad(xf, (0, LANES - rem))
        tf = jnp.pad(tf, (0, LANES - rem))
    rows = xf.size // LANES
    x2 = xf.reshape(rows, LANES)
    t2 = tf.reshape(rows, LANES)
    if rows < SUBLANES:
        x2 = jnp.pad(x2, ((0, SUBLANES - rows), (0, 0)))
        t2 = jnp.pad(t2, ((0, SUBLANES - rows), (0, 0)))
        rows = SUBLANES

    # Block rows: as large as the per-generation budget allows, but no bigger
    # than one core's share, rounded to the dtype-dependent sublane multiple.
    row_align = _row_alignment(x.dtype, target.dtype)
    blk_cap = max(row_align, (block_rows // row_align) * row_align)
    per_core_rows = -(-rows // ncores)
    blk = min(blk_cap, _round_up(per_core_rows, row_align))

    n_blocks = -(-rows // blk)
    blocks_per_core = -(-n_blocks // ncores)
    n_full_blocks = rows // blk
    has_tail = (rows % blk) != 0
    has_phantom = blocks_per_core * ncores != n_blocks
    guard_blocks = has_tail or has_phantom

    def in_map(c, i):
        # Clamp phantom blocks onto the last real block; the kernel skips them.
        return (jnp.minimum(c * blocks_per_core + i, n_blocks - 1), 0)

    kernel = functools.partial(
        _mse_partial_kernel, rows=rows, blk=blk,
        blocks_per_core=blocks_per_core, n_full_blocks=n_full_blocks,
        has_tail=has_tail, guard_blocks=guard_blocks)

    if ncores > 1:
        dim_sem = (getattr(pltpu, "CORE_PARALLEL", pltpu.PARALLEL), pltpu.ARBITRARY)
    else:
        dim_sem = ("arbitrary", "arbitrary")

    partials = pl.pallas_call(
        kernel,
        out_shape=jax.ShapeDtypeStruct((ncores * SUBLANES, LANES), jnp.float32),
        grid_spec=pltpu.PrefetchScalarGridSpec(
            num_scalar_prefetch=0,
            grid=(ncores, blocks_per_core),
            in_specs=[
                pl.BlockSpec((blk, LANES), in_map),
                pl.BlockSpec((blk, LANES), in_map),
            ],
            # Per-core output slab, resident across the reduction axis.
            out_specs=pl.BlockSpec((SUBLANES, LANES), lambda c, i: (c, 0)),
        ),
        compiler_params=pltpu.CompilerParams(
            dimension_semantics=dim_sem,
            vmem_limit_bytes=cfg["vmem_limit"]),
    )(x2, t2)

    # Final cross-lane reduce + mean scale are O(2k) flops: leave them to XLA.
    # 1/N is built with exact Python arithmetic at trace time, avoiding
    # float32(total_n) rounding for tensors > 2**24 elements.
    loss = jnp.sum(partials) * jnp.float32(1.0 / total_n)

    # The torch module returns `input` unchanged and stashes the loss attribute.
    # TODO(synk): stateful `self.loss` attribute has no JAX equivalent; the loss
    # is returned alongside the pass-through input instead.
    return x, loss


if __name__ == "__main__":
    key = jax.random.PRNGKey(0)
    k1, k2, k3, k4 = jax.random.split(key, 4)

    # NCHW, small shapes: batch=2, channels=4, spatial=16 (numel % 128 == 0).
    x = jax.random.normal(k1, (2, 4, 16, 16), dtype=jnp.float32)
    target = jax.random.normal(k2, (2, 4, 16, 16), dtype=jnp.float32)
    out, loss = content_loss_forward(x, target)
    out = jax.block_until_ready(out)
    loss = jax.block_until_ready(loss)
    ref_loss = jnp.mean((x - target) ** 2)
    assert jnp.allclose(loss, ref_loss, rtol=1e-5, atol=1e-6), (loss, ref_loss)
    assert jnp.array_equal(out, x)

    # Extra check exercising the partial-tail mask path (rows not block-aligned).
    x_odd = jax.random.normal(k3, (3, 5, 16, 16), dtype=jnp.float32)
    t_odd = jax.random.normal(k4, (3, 5, 16, 16), dtype=jnp.float32)
    out_odd, loss_odd = content_loss_forward(x_odd, t_odd)
    loss_odd = jax.block_until_ready(loss_odd)
    ref_odd = jnp.mean((x_odd - t_odd) ** 2)
    assert jnp.allclose(loss_odd, ref_odd, rtol=1e-5, atol=1e-6), (loss_odd, ref_odd)
    assert jnp.array_equal(out_odd, x_odd)

    print("KERNEL_OK")
</pallas_src>

<mosaic_0001>
module attributes {stable_mosaic.version = 11 : i64} {
  func.func @_mse_partial_kernel(%arg0: i32, %arg1: i32, %arg2: memref<16x128xf32, #tpu.memory_space<vmem>>, %arg3: memref<16x128xf32, #tpu.memory_space<vmem>>, %arg4: memref<8x128xf32, #tpu.memory_space<vmem>>) attributes {dimension_semantics = [#tpu.dimension_semantics<arbitrary>, #tpu.dimension_semantics<arbitrary>], iteration_bounds = array<i64: 1, 1>, scalar_prefetch = 0 : i64, scratch_operands = 0 : i64, tpu.core_type = #tpu.core_type<tc>, window_params = [{transform_indices = @transform_0, window_bounds = array<i64: 16, 128>}, {transform_indices = @transform_1, window_bounds = array<i64: 16, 128>}, {transform_indices = @transform_2, window_bounds = array<i64: 8, 128>}]} {
    %c0_i32 = arith.constant 0 : i32
    %0 = arith.cmpi eq, %arg1, %c0_i32 : i32
    %1 = arith.extui %0 : i1 to i32
    %c0_i32_0 = arith.constant 0 : i32
    %2 = arith.cmpi ne, %1, %c0_i32_0 : i32
    scf.if %2 {
      %cst_8 = arith.constant 0.000000e+00 : f32
      %12 = vector.broadcast %cst_8 : f32 to vector<8x128xf32>
      %c0_9 = arith.constant 0 : index
      %c0_10 = arith.constant 0 : index
      %13 = vector.load %arg4[%c0_9, %c0_10] : memref<8x128xf32, #tpu.memory_space<vmem>>, vector<8x128xf32>
      tpu.vector_store %arg4[%c0_9, %c0_10], %12 {strides = array<i32>} : memref<8x128xf32, #tpu.memory_space<vmem>>, vector<8x128xf32>,
    } else {
    }
    %c0 = arith.constant 0 : index
    %c0_1 = arith.constant 0 : index
    %3 = vector.load %arg2[%c0, %c0_1] : memref<16x128xf32, #tpu.memory_space<vmem>>, vector<16x128xf32>
    %c0_2 = arith.constant 0 : index
    %c0_3 = arith.constant 0 : index
    %4 = vector.load %arg3[%c0_2, %c0_3] : memref<16x128xf32, #tpu.memory_space<vmem>>, vector<16x128xf32>
    %5 = arith.subf %3, %4 : vector<16x128xf32>
    %6 = arith.mulf %5, %5 : vector<16x128xf32>
    %c0_4 = arith.constant 0 : index
    %c0_5 = arith.constant 0 : index
    %7 = vector.load %arg4[%c0_4, %c0_5] : memref<8x128xf32, #tpu.memory_space<vmem>>, vector<8x128xf32>
    %8 = vector.shape_cast %6 : vector<16x128xf32> to vector<2x8x128xf32>
    %cst = arith.constant dense<0.000000e+00> : vector<8x128xf32>
    %9 = vector.multi_reduction <add>, %8, %cst [0] : vector<2x8x128xf32> to vector<8x128xf32>
    %10 = arith.addf %7, %9 : vector<8x128xf32>
    %c0_6 = arith.constant 0 : index
    %c0_7 = arith.constant 0 : index
    %11 = vector.load %arg4[%c0_6, %c0_7] : memref<8x128xf32, #tpu.memory_space<vmem>>, vector<8x128xf32>
    tpu.vector_store %arg4[%c0_6, %c0_7], %10 {strides = array<i32>} : memref<8x128xf32, #tpu.memory_space<vmem>>, vector<8x128xf32>,
    return
  }
  func.func @transform_0(%arg0: i32, %arg1: i32) -> (i32, i32) {
    %c1_i32 = arith.constant 1 : i32
    %0 = arith.muli %arg0, %c1_i32 : i32
    %1 = arith.addi %0, %arg1 : i32
    %c0_i32 = arith.constant 0 : i32
    %2 = arith.minsi %1, %c0_i32 : i32
    %c0_i32_0 = arith.constant 0 : i32
    %c0_i32_1 = arith.constant 0 : i32
    return %2, %c0_i32_0 : i32, i32
  }
  func.func @transform_1(%arg0: i32, %arg1: i32) -> (i32, i32) {
    %c1_i32 = arith.constant 1 : i32
    %0 = arith.muli %arg0, %c1_i32 : i32
    %1 = arith.addi %0, %arg1 : i32
    %c0_i32 = arith.constant 0 : i32
    %2 = arith.minsi %1, %c0_i32 : i32
    %c0_i32_0 = arith.constant 0 : i32
    %c0_i32_1 = arith.constant 0 : i32
    return %2, %c0_i32_0 : i32, i32
  }
  func.func @transform_2(%arg0: i32, %arg1: i32) -> (i32, i32) {
    %c0_i32 = arith.constant 0 : i32
    %c0_i32_0 = arith.constant 0 : i32
    return %arg0, %c0_i32 : i32, i32
  }
}

</mosaic_0001>

<llo_original>
// kernel: tpu_custom_call.1
$region0: #{tpu_custom_call.1}
  #allocation0 [shape = 'u32[]', space=smem, size = 0x4, offset = 0x4, fixed_abs, tag = 'smem constant byte address 0x4 - core index']
  #allocation1 [shape = 'u32[144,128]{1,0:T(1,128)}', space=vmem, size = 0x12000, scoped, tag = 'internal scratch']
  %s0 = inlined_call_operand.hbm [shape: f32[16,128], index: 0, kind: input, shape index: {}]
  %s1 = inlined_call_operand.hbm [shape: f32[16,128], index: 1, kind: input, shape index: {}]
  %s2 = inlined_call_operand.hbm [shape: f32[8,128], index: 2, kind: output, shape index: {}]
  %s3 = sld [smem:[#allocation0]]
  $region30: #{tpu_custom_call.1} parent=0
    _
  %s5 = ssub.s32 1, %s3
  %s6 = scalar_select 0, %s5, %s3
  $region1: #{tpu_custom_call.1} parent=0
    #allocation2 [shape = 'u8[8192]{0}', space=vmem, size = 0x2000, scoped, tag = 'input window, operand 0, single buffered']
    #allocation3 [shape = 's32[1]{0}', space=sflag, size = 0x4, scoped, tag = 'scoped memory for tpu_custom_call.1']
    #allocation4 [shape = 's32[1]{0}', space=sflag, size = 0x4, scoped, tag = 'scoped memory for tpu_custom_call.1']
    #allocation5 [shape = 'u8[8192]{0}', space=vmem, size = 0x2000, scoped, tag = 'input window, operand 1, single buffered']
    #allocation6 [shape = 's32[1]{0}', space=sflag, size = 0x4, scoped, tag = 'scoped memory for tpu_custom_call.1']
    #allocation7 [shape = 'u8[4096]{0}', space=vmem, size = 0x1000, scoped, tag = 'output window, operand 0, single buffered']
    %7 = vsyncpa [#allocation3], 0
    %8 = vsyncpa [#allocation6], 0
    %9 = vsyncpa [#allocation4], 0
    // Predicated region
    $region2: #{tpu_custom_call.1} parent=1 // pred_check
      _
    $region3: #{tpu_custom_call.1} parent=1 // pred_check_branch
      %11 = sbr.rel (0) target = $region5
    $region4: #{tpu_custom_call.1} parent=1 // pred_region
      %s12 = sadd.s32 0, 0
      %p13 = scmp.lt.s32.totalorder %s12, 0
      %s14 = scalar_select %p13, %s12, 0
      %s15 = smul.u32 2, %s14
      %s17 = ssub.s32 256, 256
      %18 = vsyncadd [#allocation3], %s17
      %s19 = smul.addr %s15, 128
      %s20 = scalar_lea.hbm %s0, %s19
      %s21 = sshll.u32 [#allocation2], 4
      %s22 = int_to_ptr.vmem [resolvable:$true] %s21
      %27 = dma.hbm_to_vmem [thread:$0]  %s20, 256, %s22, [#allocation3], 128, 128, 8
    $region5: #{tpu_custom_call.1} parent=1 // pred_fallthru
      _
    // Predicated region
    $region6: #{tpu_custom_call.1} parent=1 // pred_check
      _
    $region7: #{tpu_custom_call.1} parent=1 // pred_check_branch
      %29 = sbr.rel (0) target = $region9
    $region8: #{tpu_custom_call.1} parent=1 // pred_region
      %s30 = sadd.s32 0, 0
      %p31 = scmp.lt.s32.totalorder %s30, 0
      %s32 = scalar_select %p31, %s30, 0
      %s33 = smul.u32 2, %s32
      %s35 = ssub.s32 256, 256
      %36 = vsyncadd [#allocation6], %s35
      %s37 = smul.addr %s33, 128
      %s38 = scalar_lea.hbm %s1, %s37
      %s39 = sshll.u32 [#allocation5], 4
      %s40 = int_to_ptr.vmem [resolvable:$true] %s39
      %45 = dma.hbm_to_vmem [thread:$0]  %s38, 256, %s40, [#allocation6], 128, 128, 8
    $region9: #{tpu_custom_call.1} parent=1 // pred_fallthru
      _
    // Predicated region
    $region10: #{tpu_custom_call.1} parent=1 // pred_check
      _
    $region11: #{tpu_custom_call.1} parent=1 // pred_check_branch
      %47 = sbr.rel (0) target = $region13
    $region12: #{tpu_custom_call.1} parent=1 // pred_region
      %48 = dma.done [#allocation3], 256
    $region13: #{tpu_custom_call.1} parent=1 // pred_fallthru
      _
    // Predicated region
    $region14: #{tpu_custom_call.1} parent=1 // pred_check
      _
    $region15: #{tpu_custom_call.1} parent=1 // pred_check_branch
      %50 = sbr.rel (0) target = $region17
    $region16: #{tpu_custom_call.1} parent=1 // pred_region
      %51 = dma.done [#allocation6], 256
    $region17: #{tpu_custom_call.1} parent=1 // pred_fallthru
      _
    %s52 = sadd.s32 0, 0
    %p53 = scmp.lt.s32.totalorder %s52, 0
    %s54 = scalar_select %p53, %s52, 0
    %s55 = smul.u32 2, %s54
    %s56 = sadd.s32 0, 0
    %p57 = scmp.lt.s32.totalorder %s56, 0
    %s58 = scalar_select %p57, %s56, 0
    %s59 = smul.u32 2, %s58
    %p60 = scmp.eq.s32.totalorder 0, 0
    // Predicated region
    $region18: #{tpu_custom_call.1} parent=1 // pred_check
      %p61 = pneg %p60
    $region19: #{tpu_custom_call.1} parent=1 // pred_check_branch
      %63 = sbr.rel (%p61) target = $region21
    $region20: #{tpu_custom_call.1} parent=1 // pred_region
      %64 = vst [vmem:[#allocation7] sm:$0xff] 0.0
    $region21: #{tpu_custom_call.1} parent=1 // pred_fallthru
      _
    %v65 = vld [vmem:[#allocation2] sm:$0xff]
    %v66 = vld [vmem:[#allocation2 + $0x8] sm:$0xff]
    %v67 = vld [vmem:[#allocation5] sm:$0xff]
    %v68 = vld [vmem:[#allocation5 + $0x8] sm:$0xff]
    %v69 = vsub.f32 %v65, %v67
    %v70 = vsub.f32 %v66, %v68
    %v71 = vmul.f32 %v69, %v69
    %v72 = vmul.f32 %v70, %v70
    %v73 = vld [vmem:[#allocation7] sm:$0xff]
    %v74 = vadd.f32 %v71, %v72
    %v75 = vadd.f32 %v73, %v74
    %76 = vst [vmem:[#allocation7] sm:$0xff] %v75
    // Predicated region
    $region22: #{tpu_custom_call.1} parent=1 // pred_check
      _
    $region23: #{tpu_custom_call.1} parent=1 // pred_check_branch
      %78 = sbr.rel (0) target = $region25
    $region24: #{tpu_custom_call.1} parent=1 // pred_region
      %s80 = ssub.s32 128, 128
      %81 = vsyncadd [#allocation4], %s80
      %s83 = sshll.u32 [#allocation7], 4
      %s84 = int_to_ptr.vmem [resolvable:$true] %s83
      %86 = dma.vmem_to_hbm [thread:$0]  %s84, 128, %s2, [#allocation4]
    $region25: #{tpu_custom_call.1} parent=1 // pred_fallthru
      _
    // Predicated region
    $region26: #{tpu_custom_call.1} parent=1 // pred_check
      _
    $region27: #{tpu_custom_call.1} parent=1 // pred_check_branch
      %88 = sbr.rel (0) target = $region29
    $region28: #{tpu_custom_call.1} parent=1 // pred_region
      %89 = dma.done [#allocation4], 128
    $region29: #{tpu_custom_call.1} parent=1 // pred_fallthru
      _
    %90 = vsyncpa [#allocation3], 1
    %91 = vsyncpa [#allocation6], 1
    %92 = vsyncpa [#allocation4], 1

</llo_original>
